<compile_context>
chip_gen: v6e
topology: v6e:2x2x1
jax: 0.10.0
libtpu: 0.0.40
codegen_flags: <defaults>
</compile_context>

<pallas_src>
import functools

import jax
import jax.numpy as jnp
from jax.experimental import pallas as pl
from jax.experimental.pallas import tpu as pltpu

# Logical (PyTorch) dims.
IN_F, H1, H2, OUT_F = 30 * 6, 100, 50, 30
# MXU/lane-friendly padded hidden dims (input stays 180, output stays 30).
H1_P, H2_P = 128, 128


def _mlp_kernel(x_ref, w1_ref, b1_ref, w2_ref, b2_ref, w3_ref, b3_ref, o_ref):
    """One batch tile: fused fc1+ReLU -> fc2+ReLU -> fc3, all in VMEM.

    Weights are resident bf16; x is streamed f32 and cast to bf16 for the MXU.
    Accumulation, bias add and ReLU stay in f32.
    """
    x = x_ref[...].astype(jnp.bfloat16)

    h1 = jnp.dot(x, w1_ref[...], preferred_element_type=jnp.float32) + b1_ref[...]
    h1 = jnp.maximum(h1, 0.0).astype(jnp.bfloat16)

    h2 = jnp.dot(h1, w2_ref[...], preferred_element_type=jnp.float32) + b2_ref[...]
    h2 = jnp.maximum(h2, 0.0).astype(jnp.bfloat16)

    o_ref[...] = (
        jnp.dot(h2, w3_ref[...], preferred_element_type=jnp.float32) + b3_ref[...]
    ).astype(o_ref.dtype)


def _pad2(a, rows, cols):
    r, c = a.shape
    return jnp.pad(a, ((0, rows - r), (0, cols - c)))


def pad_params(params):
    """Zero-pad hidden dims to 128 and cast weights to bf16 (done once)."""
    w1, b1, w2, b2, w3, b3 = params
    return (
        _pad2(w1, IN_F, H1_P).astype(jnp.bfloat16), _pad2(b1, 1, H1_P),
        _pad2(w2, H1_P, H2_P).astype(jnp.bfloat16), _pad2(b2, 1, H2_P),
        _pad2(w3, H2_P, OUT_F).astype(jnp.bfloat16), b3,
    )


@functools.partial(jax.jit, static_argnames=("block_b",))
def net_forward(x, padded_params, block_b=1024):
    """x: (B, 180) float32 -> (B, 30) float32."""
    w1, b1, w2, b2, w3, b3 = padded_params
    B = x.shape[0]

    # Batch tile: multiple of 8 sublanes, at most block_b, and kept small
    # enough that the grid has ~8+ steps (v7x has 2 TensorCores; also keeps
    # the x/out DMA pipeline busy).  Ragged last tile is handled by Pallas.
    target_steps = 8
    tb_cap = ((pl.cdiv(B, target_steps) + 7) // 8) * 8
    tb = max(8, min(block_b, tb_cap))
    grid = (pl.cdiv(B, tb),)

    flops = 2 * B * (IN_F * H1_P + H1_P * H2_P + H2_P * OUT_F)
    bytes_accessed = (
        4 * B * (IN_F + OUT_F)                             # f32 x in, f32 out
        + 2 * (IN_F * H1_P + H1_P * H2_P + H2_P * OUT_F)   # bf16 weights (once)
        + 4 * (H1_P + H2_P + OUT_F)                        # f32 biases (once)
    )

    return pl.pallas_call(
        _mlp_kernel,
        out_shape=jax.ShapeDtypeStruct((B, OUT_F), jnp.float32),
        grid=grid,
        in_specs=[
            pl.BlockSpec((tb, IN_F), lambda i: (i, 0)),     # x: streamed per tile
            pl.BlockSpec((IN_F, H1_P), lambda i: (0, 0)),   # weights/biases: resident
            pl.BlockSpec((1, H1_P), lambda i: (0, 0)),
            pl.BlockSpec((H1_P, H2_P), lambda i: (0, 0)),
            pl.BlockSpec((1, H2_P), lambda i: (0, 0)),
            pl.BlockSpec((H2_P, OUT_F), lambda i: (0, 0)),
            pl.BlockSpec((1, OUT_F), lambda i: (0, 0)),
        ],
        out_specs=pl.BlockSpec((tb, OUT_F), lambda i: (i, 0)),
        compiler_params=pltpu.CompilerParams(
            dimension_semantics=("parallel",),
        ),
        cost_estimate=pl.CostEstimate(
            flops=flops, bytes_accessed=bytes_accessed, transcendentals=0
        ),
    )(x, w1, b1, w2, b2, w3, b3)


def init_params(key):
    """Deterministic init mirroring nn.Linear's U(-1/sqrt(fan_in), 1/sqrt(fan_in)).

    Weights are stored as (in_features, out_features) (transposed vs. torch).
    Biases are kept 2-D (1, out_features) for TPU-friendly layouts.
    """
    ks = jax.random.split(key, 6)

    def linear(kw, kb, fan_in, fan_out):
        bound = 1.0 / jnp.sqrt(jnp.float32(fan_in))
        w = jax.random.uniform(kw, (fan_in, fan_out), jnp.float32, -bound, bound)
        b = jax.random.uniform(kb, (1, fan_out), jnp.float32, -bound, bound)
        return w, b

    w1, b1 = linear(ks[0], ks[1], IN_F, H1)
    w2, b2 = linear(ks[2], ks[3], H1, H2)
    w3, b3 = linear(ks[4], ks[5], H2, OUT_F)
    return (w1, b1, w2, b2, w3, b3)


def net_forward_ref(x, params):
    """Pure-JAX f32 reference for correctness checking (unpadded)."""
    w1, b1, w2, b2, w3, b3 = params
    h1 = jnp.maximum(x @ w1 + b1, 0.0)
    h2 = jnp.maximum(h1 @ w2 + b2, 0.0)
    return h2 @ w3 + b3


if __name__ == "__main__":
    key = jax.random.PRNGKey(0)
    k_x, k_x2, k_x3, k_p = jax.random.split(key, 4)

    params = init_params(k_p)
    padded_params = pad_params(params)

    def check(x, tag):
        out = jax.block_until_ready(net_forward(x, padded_params))
        ref = jax.block_until_ready(net_forward_ref(x, params))
        assert out.shape == ref.shape, (tag, out.shape, ref.shape)
        # bf16 MXU operands (f32 accumulation): tolerance loosened vs f32 ref.
        assert jnp.allclose(out, ref, atol=5e-2, rtol=5e-2), f"mismatch vs reference ({tag})"

    # Single-tile smoke test.
    check(jax.random.normal(k_x, (8, IN_F), dtype=jnp.float32), "B=8")
    # Ragged batch not a multiple of the sublane tile (tb=8, grid=2, last tile 5 rows).
    check(jax.random.normal(k_x3, (13, IN_F), dtype=jnp.float32), "B=13")
    # Multi-step grid with a partial final tile (tb=40, grid=8, last tile 20 rows).
    check(jax.random.normal(k_x2, (300, IN_F), dtype=jnp.float32), "B=300")

    print("KERNEL_OK")
</pallas_src>

<mosaic_0001>
module attributes {stable_mosaic.version = 11 : i64} {
  func.func @_mlp_kernel(%arg0: i32, %arg1: memref<8x180xf32, #tpu.memory_space<vmem>>, %arg2: memref<180x128xbf16, #tpu.memory_space<vmem>>, %arg3: memref<1x128xf32, #tpu.memory_space<vmem>>, %arg4: memref<128x128xbf16, #tpu.memory_space<vmem>>, %arg5: memref<1x128xf32, #tpu.memory_space<vmem>>, %arg6: memref<128x30xbf16, #tpu.memory_space<vmem>>, %arg7: memref<1x30xf32, #tpu.memory_space<vmem>>, %arg8: memref<8x30xf32, #tpu.memory_space<vmem>>) attributes {dimension_semantics = [#tpu.dimension_semantics<parallel>], iteration_bounds = array<i64: 1>, scalar_prefetch = 0 : i64, scratch_operands = 0 : i64, tpu.core_type = #tpu.core_type<tc>, window_params = [{transform_indices = @transform_0, window_bounds = array<i64: 8, 180>}, {pipeline_mode = #tpu.pipeline_mode<synchronous>, transform_indices = @transform_1, window_bounds = array<i64: 180, 128>}, {pipeline_mode = #tpu.pipeline_mode<synchronous>, transform_indices = @transform_2, window_bounds = array<i64: 1, 128>}, {pipeline_mode = #tpu.pipeline_mode<synchronous>, transform_indices = @transform_3, window_bounds = array<i64: 128, 128>}, {pipeline_mode = #tpu.pipeline_mode<synchronous>, transform_indices = @transform_4, window_bounds = array<i64: 1, 128>}, {pipeline_mode = #tpu.pipeline_mode<synchronous>, transform_indices = @transform_5, window_bounds = array<i64: 128, 30>}, {pipeline_mode = #tpu.pipeline_mode<synchronous>, transform_indices = @transform_6, window_bounds = array<i64: 1, 30>}, {transform_indices = @transform_7, window_bounds = array<i64: 8, 30>}]} {
    %c0 = arith.constant 0 : index
    %c0_0 = arith.constant 0 : index
    %0 = vector.load %arg1[%c0, %c0_0] : memref<8x180xf32, #tpu.memory_space<vmem>>, vector<8x180xf32>
    %1 = arith.truncf %0 : vector<8x180xf32> to vector<8x180xbf16>
    %c0_1 = arith.constant 0 : index
    %c0_2 = arith.constant 0 : index
    %2 = vector.load %arg2[%c0_1, %c0_2] : memref<180x128xbf16, #tpu.memory_space<vmem>>, vector<180x128xbf16>
    %cst = arith.constant dense<0.000000e+00> : vector<8x128xf32>
    %3 = tpu.matmul %1, %2, %cst {dimension_numbers = #tpu.dot_dimension_numbers<[1], [0], [0], [1], [0, 0, 1, 1], [], []>} : vector<8x180xbf16>, vector<180x128xbf16>, vector<8x128xf32> -> vector<8x128xf32>
    %c0_3 = arith.constant 0 : index
    %c0_4 = arith.constant 0 : index
    %4 = vector.load %arg3[%c0_3, %c0_4] : memref<1x128xf32, #tpu.memory_space<vmem>>, vector<1x128xf32>
    %5 = vector.broadcast %4 : vector<1x128xf32> to vector<8x128xf32>
    %6 = arith.addf %3, %5 : vector<8x128xf32>
    %cst_5 = arith.constant 0.000000e+00 : f32
    %7 = vector.broadcast %cst_5 : f32 to vector<8x128xf32>
    %8 = arith.maximumf %6, %7 : vector<8x128xf32>
    %9 = arith.truncf %8 : vector<8x128xf32> to vector<8x128xbf16>
    %c0_6 = arith.constant 0 : index
    %c0_7 = arith.constant 0 : index
    %10 = vector.load %arg4[%c0_6, %c0_7] : memref<128x128xbf16, #tpu.memory_space<vmem>>, vector<128x128xbf16>
    %cst_8 = arith.constant dense<0.000000e+00> : vector<8x128xf32>
    %11 = tpu.matmul %9, %10, %cst_8 {dimension_numbers = #tpu.dot_dimension_numbers<[1], [0], [0], [1], [0, 0, 1, 1], [], []>} : vector<8x128xbf16>, vector<128x128xbf16>, vector<8x128xf32> -> vector<8x128xf32>
    %c0_9 = arith.constant 0 : index
    %c0_10 = arith.constant 0 : index
    %12 = vector.load %arg5[%c0_9, %c0_10] : memref<1x128xf32, #tpu.memory_space<vmem>>, vector<1x128xf32>
    %13 = vector.broadcast %12 : vector<1x128xf32> to vector<8x128xf32>
    %14 = arith.addf %11, %13 : vector<8x128xf32>
    %cst_11 = arith.constant 0.000000e+00 : f32
    %15 = vector.broadcast %cst_11 : f32 to vector<8x128xf32>
    %16 = arith.maximumf %14, %15 : vector<8x128xf32>
    %17 = arith.truncf %16 : vector<8x128xf32> to vector<8x128xbf16>
    %c0_12 = arith.constant 0 : index
    %c0_13 = arith.constant 0 : index
    %18 = vector.load %arg6[%c0_12, %c0_13] : memref<128x30xbf16, #tpu.memory_space<vmem>>, vector<128x30xbf16>
    %cst_14 = arith.constant dense<0.000000e+00> : vector<8x30xf32>
    %19 = tpu.matmul %17, %18, %cst_14 {dimension_numbers = #tpu.dot_dimension_numbers<[1], [0], [0], [1], [0, 0, 1, 1], [], []>} : vector<8x128xbf16>, vector<128x30xbf16>, vector<8x30xf32> -> vector<8x30xf32>
    %c0_15 = arith.constant 0 : index
    %c0_16 = arith.constant 0 : index
    %20 = vector.load %arg7[%c0_15, %c0_16] : memref<1x30xf32, #tpu.memory_space<vmem>>, vector<1x30xf32>
    %21 = vector.broadcast %20 : vector<1x30xf32> to vector<8x30xf32>
    %22 = arith.addf %19, %21 : vector<8x30xf32>
    %c0_17 = arith.constant 0 : index
    %c0_18 = arith.constant 0 : index
    %23 = vector.load %arg8[%c0_17, %c0_18] : memref<8x30xf32, #tpu.memory_space<vmem>>, vector<8x30xf32>
    tpu.vector_store %arg8[%c0_17, %c0_18], %22 {strides = array<i32>} : memref<8x30xf32, #tpu.memory_space<vmem>>, vector<8x30xf32>,
    return
  }
  func.func @transform_0(%arg0: i32) -> (i32, i32) {
    %c0_i32 = arith.constant 0 : i32
    %c0_i32_0 = arith.constant 0 : i32
    return %arg0, %c0_i32 : i32, i32
  }
  func.func @transform_1(%arg0: i32) -> (i32, i32) {
    %c0_i32 = arith.constant 0 : i32
    %c0_i32_0 = arith.constant 0 : i32
    %c0_i32_1 = arith.constant 0 : i32
    return %c0_i32, %c0_i32_0 : i32, i32
  }
  func.func @transform_2(%arg0: i32) -> (i32, i32) {
    %c0_i32 = arith.constant 0 : i32
    %c0_i32_0 = arith.constant 0 : i32
    %c0_i32_1 = arith.constant 0 : i32
    return %c0_i32, %c0_i32_0 : i32, i32
  }
  func.func @transform_3(%arg0: i32) -> (i32, i32) {
    %c0_i32 = arith.constant 0 : i32
    %c0_i32_0 = arith.constant 0 : i32
    %c0_i32_1 = arith.constant 0 : i32
    return %c0_i32, %c0_i32_0 : i32, i32
  }
  func.func @transform_4(%arg0: i32) -> (i32, i32) {
    %c0_i32 = arith.constant 0 : i32
    %c0_i32_0 = arith.constant 0 : i32
    %c0_i32_1 = arith.constant 0 : i32
    return %c0_i32, %c0_i32_0 : i32, i32
  }
  func.func @transform_5(%arg0: i32) -> (i32, i32) {
    %c0_i32 = arith.constant 0 : i32
    %c0_i32_0 = arith.constant 0 : i32
    %c0_i32_1 = arith.constant 0 : i32
    return %c0_i32, %c0_i32_0 : i32, i32
  }
  func.func @transform_6(%arg0: i32) -> (i32, i32) {
    %c0_i32 = arith.constant 0 : i32
    %c0_i32_0 = arith.constant 0 : i32
    %c0_i32_1 = arith.constant 0 : i32
    return %c0_i32, %c0_i32_0 : i32, i32
  }
  func.func @transform_7(%arg0: i32) -> (i32, i32) {
    %c0_i32 = arith.constant 0 : i32
    %c0_i32_0 = arith.constant 0 : i32
    return %arg0, %c0_i32 : i32, i32
  }
}

</mosaic_0001>

<llo_original>
// kernel: net_forward.1
$region0: #{net_forward.1}
  #allocation0 [shape = 'u32[]', space=smem, size = 0x4, offset = 0x4, fixed_abs, tag = 'smem constant byte address 0x4 - core index']
  #allocation1 [shape = 'u32[144,128]{1,0:T(1,128)}', space=vmem, size = 0x12000, scoped, tag = 'internal scratch']
  %s0 = inlined_call_operand.vmem [shape: f32[8,180], index: 0, kind: input, shape index: {}]
  %s1 = inlined_call_operand.hbm [shape: bf16[180,128], index: 1, kind: input, shape index: {}]
  %s2 = inlined_call_operand.vmem [shape: f32[1,128], index: 2, kind: input, shape index: {}]
  %s3 = inlined_call_operand.vmem [shape: bf16[128,128], index: 3, kind: input, shape index: {}]
  %s4 = inlined_call_operand.vmem [shape: f32[1,128], index: 4, kind: input, shape index: {}]
  %s5 = inlined_call_operand.vmem [shape: bf16[128,30], index: 5, kind: input, shape index: {}]
  %s6 = inlined_call_operand.vmem [shape: f32[1,30], index: 6, kind: input, shape index: {}]
  %s7 = inlined_call_operand.hbm [shape: f32[8,30], index: 7, kind: output, shape index: {}]
  %s8 = sld [smem:[#allocation0]]
  $region42: #{net_forward.1} parent=0
    _
  %s10 = ssub.s32 1, %s8
  %s11 = scalar_select 0, %s10, %s8
  $region1: #{net_forward.1} parent=0
    #allocation2 [shape = 'u8[47104]{0}', space=vmem, size = 0xb800, scoped, tag = 'input window, operand 1, single buffered']
    #allocation3 [shape = 's32[1]{0}', space=sflag, size = 0x4, scoped, tag = 'scoped memory for net_forward.1']
    #allocation4 [shape = 's32[1]{0}', space=sflag, size = 0x4, scoped, tag = 'scoped memory for net_forward.1']
    #allocation5 [shape = 'u8[4096]{0}', space=vmem, size = 0x1000, scoped, tag = 'output window, operand 0, single buffered']
    %12 = vsyncpa [#allocation3], 0
    %13 = vsyncpa [#allocation4], 0
    // Predicated region
    $region2: #{net_forward.1} parent=1 // pred_check
      _
    $region3: #{net_forward.1} parent=1 // pred_check_branch
      %15 = sbr.rel (0) target = $region5
    $region4: #{net_forward.1} parent=1 // pred_region
      _
    $region5: #{net_forward.1} parent=1 // pred_fallthru
      _
    // Predicated region
    $region6: #{net_forward.1} parent=1 // pred_check
      _
    $region7: #{net_forward.1} parent=1 // pred_check_branch
      %17 = sbr.rel (0) target = $region9
    $region8: #{net_forward.1} parent=1 // pred_region
      %s19 = ssub.s32 1472, 1472
      %20 = vsyncadd [#allocation3], %s19
      %s21 = sshll.u32 [#allocation2], 4
      %s22 = int_to_ptr.vmem [resolvable:$true] %s21
      %27 = dma.hbm_to_vmem [thread:$0]  %s1, 1472, %s22, [#allocation3], 64, 64, 4
    $region9: #{net_forward.1} parent=1 // pred_fallthru
      _
    // Predicated region
    $region10: #{net_forward.1} parent=1 // pred_check
      _
    $region11: #{net_forward.1} parent=1 // pred_check_branch
      %29 = sbr.rel (0) target = $region13
    $region12: #{net_forward.1} parent=1 // pred_region
      _
    $region13: #{net_forward.1} parent=1 // pred_fallthru
      _
    // Predicated region
    $region14: #{net_forward.1} parent=1 // pred_check
      _
    $region15: #{net_forward.1} parent=1 // pred_check_branch
      %31 = sbr.rel (0) target = $region17
    $region16: #{net_forward.1} parent=1 // pred_region
      _
    $region17: #{net_forward.1} parent=1 // pred_fallthru
      _
    // Predicated region
    $region18: #{net_forward.1} parent=1 // pred_check
      _
    $region19: #{net_forward.1} parent=1 // pred_check_branch
      %33 = sbr.rel (0) target = $region21
    $region20: #{net_forward.1} parent=1 // pred_region
      _
    $region21: #{net_forward.1} parent=1 // pred_fallthru
      _
    // Predicated region
    $region22: #{net_forward.1} parent=1 // pred_check
      _
    $region23: #{net_forward.1} parent=1 // pred_check_branch
      %35 = sbr.rel (0) target = $region25
    $region24: #{net_forward.1} parent=1 // pred_region
      _
    $region25: #{net_forward.1} parent=1 // pred_fallthru
      _
    // Predicated region
    $region26: #{net_forward.1} parent=1 // pred_check
      _
    $region27: #{net_forward.1} parent=1 // pred_check_branch
      %37 = sbr.rel (0) target = $region29
    $region28: #{net_forward.1} parent=1 // pred_region
      _
    $region29: #{net_forward.1} parent=1 // pred_fallthru
      _
    // Predicated region
    $region30: #{net_forward.1} parent=1 // pred_check
      _
    $region31: #{net_forward.1} parent=1 // pred_check_branch
      %39 = sbr.rel (0) target = $region33
    $region32: #{net_forward.1} parent=1 // pred_region
      %40 = dma.done [#allocation3], 1472
    $region33: #{net_forward.1} parent=1 // pred_fallthru
      _
    %v42 = vld [vmem:[%s0] sm:$0xff]
    %v43 = vld [vmem:[%s0 + $0x8] sm:$0xff]
    %v44 = vpack.c.bf16 %v42, %v42
    %v45 = vpack.c.bf16 %v43, %v43
    %v46 = vld [vmem:[#allocation2] sm:$0xf]
    %v47 = vld [vmem:[#allocation2 + $0x4] sm:$0xf]
    %v48 = vld [vmem:[#allocation2 + $0x8] sm:$0xf]
    %v49 = vld [vmem:[#allocation2 + $0xc] sm:$0xf]
    %v50 = vld [vmem:[#allocation2 + $0x10] sm:$0xf]
    %v51 = vld [vmem:[#allocation2 + $0x14] sm:$0xf]
    %v52 = vld [vmem:[#allocation2 + $0x18] sm:$0xf]
    %v53 = vld [vmem:[#allocation2 + $0x1c] sm:$0xf]
    %v54 = vld [vmem:[#allocation2 + $0x20] sm:$0xf]
    %v55 = vld [vmem:[#allocation2 + $0x24] sm:$0xf]
    %v56 = vld [vmem:[#allocation2 + $0x28] sm:$0xf]
    %v57 = vld [vmem:[#allocation2 + $0x2c] sm:$0xf]
    %v58 = vld [vmem:[#allocation2 + $0x30] sm:$0xf]
    %v59 = vld [vmem:[#allocation2 + $0x34] sm:$0xf]
    %v60 = vld [vmem:[#allocation2 + $0x38] sm:$0xf]
    %v61 = vld [vmem:[#allocation2 + $0x3c] sm:$0xf]
    %v62 = vld [vmem:[#allocation2 + $0x40] sm:$0xf]
    %v63 = vld [vmem:[#allocation2 + $0x44] sm:$0xf]
    %v64 = vld [vmem:[#allocation2 + $0x48] sm:$0xf]
    %v65 = vld [vmem:[#allocation2 + $0x4c] sm:$0xf]
    %v66 = vld [vmem:[#allocation2 + $0x50] sm:$0xf]
    %v67 = vld [vmem:[#allocation2 + $0x54] sm:$0xf]
    %v68 = vld [vmem:[#allocation2 + $0x58] sm:$0x3]
    %v69 = vld [vmem:[%s2] sm:$0x1]
    %v71 = vlaneseq
    %v72 = vshrl.u32 %v71, 7
    %v73 = vsub.s32 0, %v72
    %v74 = vrot.slane %v69, %v73
    %v99 = vunpack.c.l.b16 %v46
    %v100 = vunpack.c.l.b16 %v47
    %v101 = vunpack.c.l.b16 %v48
    %v102 = vunpack.c.l.b16 %v49
    %v103 = vunpack.c.l.b16 %v50
    %v104 = vunpack.c.l.b16 %v51
    %v105 = vunpack.c.l.b16 %v52
    %v106 = vunpack.c.l.b16 %v53
    %v107 = vunpack.c.l.b16 %v54
    %v108 = vunpack.c.l.b16 %v55
    %v109 = vunpack.c.l.b16 %v56
    %v110 = vunpack.c.l.b16 %v57
    %v111 = vunpack.c.l.b16 %v58
    %v112 = vunpack.c.l.b16 %v59
    %v113 = vunpack.c.l.b16 %v60
    %v114 = vunpack.c.l.b16 %v61
    %v115 = vunpack.c.l.b16 %v62
    %v116 = vunpack.c.l.b16 %v63
    %v117 = vunpack.c.l.b16 %v64
    %v118 = vunpack.c.l.b16 %v65
    %v119 = vunpack.c.l.b16 %v66
    %v120 = vunpack.c.l.b16 %v67
    %v121 = vunpack.c.l.b16 %v68
    %v122 = vpack.c.b16 %v100, %v99
    %v123 = vpack.c.b16 %v102, %v101
    %v124 = vpack.c.b16 %v104, %v103
    %v125 = vpack.c.b16 %v106, %v105
    %v126 = vpack.c.b16 %v108, %v107
    %v127 = vpack.c.b16 %v110, %v109
    %v128 = vpack.c.b16 %v112, %v111
    %v129 = vpack.c.b16 %v114, %v113
    %v130 = vpack.c.b16 %v116, %v115
    %v131 = vpack.c.b16 %v118, %v117
    %v132 = vpack.c.b16 %v120, %v119
    %v133 = vpack.c.b16 %v121, %v121
    %vm145 = vcmask 424960
    %v147 = vsel %vm145, %v45, 0
    %vm149 = vcmask 1041408
    %v151 = vsel %vm149, %v133, 0
    %153 = vmatprep.subr.bf16.mxu0 0
    %154 = vmatpush1.bf16.msra.mxu0 %v129
    %155 = vmatprep.subr.bf16.mxu0 0
    %156 = vmatpush1.bf16.msra.mxu0 %v128
    %157 = vmatprep.subr.bf16.mxu0 0
    %158 = vmatpush1.bf16.msra.mxu0 %v127
    %159 = vmatprep.subr.bf16.mxu0 0
    %160 = vmatpush1.bf16.msra.mxu0 %v126
    %161 = vmatprep.subr.bf16.mxu0 0
    %162 = vmatpush1.bf16.msra.mxu0 %v125
    %163 = vmatprep.subr.bf16.mxu0 0
    %164 = vmatpush1.bf16.msra.mxu0 %v124
    %165 = vmatprep.subr.bf16.mxu0 0
    %166 = vmatpush1.bf16.msra.mxu0 %v123
    %167 = vmatprep.subr.bf16.mxu0 0
    %168 = vmatpush1.bf16.msra.mxu0 %v122
    %169 = vmatprep.subr.bf16.mxu0 0
    %170 = vmatpush2.bf16.msra.mxu0 0
    %171 = vmatprep.subr.bf16.mxu0 0
    %172 = vmatpush2.bf16.msra.mxu0 0
    %173 = vmatprep.subr.bf16.mxu0 0
    %174 = vmatpush2.bf16.msra.mxu0 0
    %175 = vmatprep.subr.bf16.mxu0 0
    %176 = vmatpush2.bf16.msra.mxu0 0
    %177 = vmatprep.subr.bf16.mxu0 0
    %178 = vmatpush2.bf16.msra.mxu0 %v151
    %179 = vmatprep.subr.bf16.mxu0 0
    %180 = vmatpush2.bf16.msra.mxu0 %v132
    %181 = vmatprep.subr.bf16.mxu0 0
    %182 = vmatpush2.bf16.msra.mxu0 %v131
    %183 = vmatprep.subr.bf16.mxu0 0
    %184 = vmatpush2.bf16.msra.mxu0 %v130
    %185 = vmatprep.mubr.bf16.mxu0 %v147
    %186 = vmatmul.mubr.bf16.gmra.mxu0 %v44
    %v187 = vpop.f32.mrf.mxu0
    %v188 = vadd.f32 %v74, %v187
    %v189 = vpop.f32.mrf.mxu0
    %v190 = vpop.f32.mrf.mxu0
    %v191 = vpop.f32.mrf.mxu0
    %192 = vdwg.mxu0
    %v193 = vmax.f32 %v188, 0.0
    %v194 = vpack.c.bf16 %v193, %v193
    %v195 = vld [vmem:[%s3] sm:$0xf]
    %v196 = vld [vmem:[%s3 + $0x4] sm:$0xf]
    %v197 = vld [vmem:[%s3 + $0x8] sm:$0xf]
    %v198 = vld [vmem:[%s3 + $0xc] sm:$0xf]
    %v199 = vld [vmem:[%s3 + $0x10] sm:$0xf]
    %v200 = vld [vmem:[%s3 + $0x14] sm:$0xf]
    %v201 = vld [vmem:[%s3 + $0x18] sm:$0xf]
    %v202 = vld [vmem:[%s3 + $0x1c] sm:$0xf]
    %v203 = vld [vmem:[%s3 + $0x20] sm:$0xf]
    %v204 = vld [vmem:[%s3 + $0x24] sm:$0xf]
    %v205 = vld [vmem:[%s3 + $0x28] sm:$0xf]
    %v206 = vld [vmem:[%s3 + $0x2c] sm:$0xf]
    %v207 = vld [vmem:[%s3 + $0x30] sm:$0xf]
    %v208 = vld [vmem:[%s3 + $0x34] sm:$0xf]
    %v209 = vld [vmem:[%s3 + $0x38] sm:$0xf]
    %v210 = vld [vmem:[%s3 + $0x3c] sm:$0xf]
    %v211 = vld [vmem:[%s4] sm:$0x1]
    %v213 = vlaneseq
    %v214 = vshrl.u32 %v213, 7
    %v215 = vsub.s32 0, %v214
    %v216 = vrot.slane %v211, %v215
    %v234 = vunpack.c.l.b16 %v195
    %v235 = vunpack.c.l.b16 %v196
    %v236 = vunpack.c.l.b16 %v197
    %v237 = vunpack.c.l.b16 %v198
    %v238 = vunpack.c.l.b16 %v199
    %v239 = vunpack.c.l.b16 %v200
    %v240 = vunpack.c.l.b16 %v201
    %v241 = vunpack.c.l.b16 %v202
    %v242 = vunpack.c.l.b16 %v203
    %v243 = vunpack.c.l.b16 %v204
    %v244 = vunpack.c.l.b16 %v205
    %v245 = vunpack.c.l.b16 %v206
    %v246 = vunpack.c.l.b16 %v207
    %v247 = vunpack.c.l.b16 %v208
    %v248 = vunpack.c.l.b16 %v209
    %v249 = vunpack.c.l.b16 %v210
    %v250 = vpack.c.b16 %v235, %v234
    %v251 = vpack.c.b16 %v237, %v236
    %v252 = vpack.c.b16 %v239, %v238
    %v253 = vpack.c.b16 %v241, %v240
    %v254 = vpack.c.b16 %v243, %v242
    %v255 = vpack.c.b16 %v245, %v244
    %v256 = vpack.c.b16 %v247, %v246
    %v257 = vpack.c.b16 %v249, %v248
    %266 = vmatprep.subr.bf16.mxu0 0
    %267 = vmatpush1.bf16.msra.mxu0 %v257
    %268 = vmatprep.subr.bf16.mxu0 0
    %269 = vmatpush1.bf16.msra.mxu0 %v256
    %270 = vmatprep.subr.bf16.mxu0 0
    %271 = vmatpush1.bf16.msra.mxu0 %v255
    %272 = vmatprep.subr.bf16.mxu0 0
    %273 = vmatpush1.bf16.msra.mxu0 %v254
    %274 = vmatprep.subr.bf16.mxu0 0
    %275 = vmatpush1.bf16.msra.mxu0 %v253
    %276 = vmatprep.subr.bf16.mxu0 0
    %277 = vmatpush1.bf16.msra.mxu0 %v252
    %278 = vmatprep.subr.bf16.mxu0 0
    %279 = vmatpush1.bf16.msra.mxu0 %v251
    %280 = vmatprep.subr.bf16.mxu0 0
    %281 = vmatpush1.bf16.msra.mxu0 %v250
    %282 = vmatprep.subr.bf16.mxu0 0
    %283 = vmatpush2.bf16.msra.mxu0 0
    %284 = vmatprep.subr.bf16.mxu0 0
    %285 = vmatpush2.bf16.msra.mxu0 0
    %286 = vmatprep.subr.bf16.mxu0 0
    %287 = vmatpush2.bf16.msra.mxu0 0
    %288 = vmatprep.subr.bf16.mxu0 0
    %289 = vmatpush2.bf16.msra.mxu0 0
    %290 = vmatprep.subr.bf16.mxu0 0
    %291 = vmatpush2.bf16.msra.mxu0 0
    %292 = vmatprep.subr.bf16.mxu0 0
    %293 = vmatpush2.bf16.msra.mxu0 0
    %294 = vmatprep.subr.bf16.mxu0 0
    %295 = vmatpush2.bf16.msra.mxu0 0
    %296 = vmatprep.subr.bf16.mxu0 0
    %297 = vmatpush2.bf16.msra.mxu0 0
    %298 = vmatprep.mubr.bf16.mxu0 0
    %299 = vmatmul.mubr.bf16.gmra.mxu0 %v194
    %v300 = vpop.f32.mrf.mxu0
    %v301 = vadd.f32 %v216, %v300
    %v302 = vpop.f32.mrf.mxu0
    %v303 = vpop.f32.mrf.mxu0
    %v304 = vpop.f32.mrf.mxu0
    %305 = vdwg.mxu0
    %v306 = vmax.f32 %v301, 0.0
    %v307 = vpack.c.bf16 %v306, %v306
    %v308 = vld [vmem:[%s5] sm:$0xf]
    %v309 = vld [vmem:[%s5 + $0x4] sm:$0xf]
    %v310 = vld [vmem:[%s5 + $0x8] sm:$0xf]
    %v311 = vld [vmem:[%s5 + $0xc] sm:$0xf]
    %v312 = vld [vmem:[%s5 + $0x10] sm:$0xf]
    %v313 = vld [vmem:[%s5 + $0x14] sm:$0xf]
    %v314 = vld [vmem:[%s5 + $0x18] sm:$0xf]
    %v315 = vld [vmem:[%s5 + $0x1c] sm:$0xf]
    %v316 = vld [vmem:[%s5 + $0x20] sm:$0xf]
    %v317 = vld [vmem:[%s5 + $0x24] sm:$0xf]
    %v318 = vld [vmem:[%s5 + $0x28] sm:$0xf]
    %v319 = vld [vmem:[%s5 + $0x2c] sm:$0xf]
    %v320 = vld [vmem:[%s5 + $0x30] sm:$0xf]
    %v321 = vld [vmem:[%s5 + $0x34] sm:$0xf]
    %v322 = vld [vmem:[%s5 + $0x38] sm:$0xf]
    %v323 = vld [vmem:[%s5 + $0x3c] sm:$0xf]
    %v324 = vld [vmem:[%s6] sm:$0x1]
    %v326 = vlaneseq
    %v327 = vshrl.u32 %v326, 7
    %v328 = vsub.s32 0, %v327
    %v329 = vrot.slane %v324, %v328
    %v347 = vunpack.c.l.b16 %v308
    %v348 = vunpack.c.l.b16 %v309
    %v349 = vunpack.c.l.b16 %v310
    %v350 = vunpack.c.l.b16 %v311
    %v351 = vunpack.c.l.b16 %v312
    %v352 = vunpack.c.l.b16 %v313
    %v353 = vunpack.c.l.b16 %v314
    %v354 = vunpack.c.l.b16 %v315
    %v355 = vunpack.c.l.b16 %v316
    %v356 = vunpack.c.l.b16 %v317
    %v357 = vunpack.c.l.b16 %v318
    %v358 = vunpack.c.l.b16 %v319
    %v359 = vunpack.c.l.b16 %v320
    %v360 = vunpack.c.l.b16 %v321
    %v361 = vunpack.c.l.b16 %v322
    %v362 = vunpack.c.l.b16 %v323
    %v363 = vpack.c.b16 %v348, %v347
    %v364 = vpack.c.b16 %v350, %v349
    %v365 = vpack.c.b16 %v352, %v351
    %v366 = vpack.c.b16 %v354, %v353
    %v367 = vpack.c.b16 %v356, %v355
    %v368 = vpack.c.b16 %v358, %v357
    %v369 = vpack.c.b16 %v360, %v359
    %v370 = vpack.c.b16 %v362, %v361
    %379 = vmatprep.subr.bf16.mxu0 0
    %380 = vmatpush1.bf16.msra.mxu0 %v370
    %381 = vmatprep.subr.bf16.mxu0 0
    %382 = vmatpush1.bf16.msra.mxu0 %v369
    %383 = vmatprep.subr.bf16.mxu0 0
    %384 = vmatpush1.bf16.msra.mxu0 %v368
    %385 = vmatprep.subr.bf16.mxu0 0
    %386 = vmatpush1.bf16.msra.mxu0 %v367
    %387 = vmatprep.subr.bf16.mxu0 0
    %388 = vmatpush1.bf16.msra.mxu0 %v366
    %389 = vmatprep.subr.bf16.mxu0 0
    %390 = vmatpush1.bf16.msra.mxu0 %v365
    %391 = vmatprep.subr.bf16.mxu0 0
    %392 = vmatpush1.bf16.msra.mxu0 %v364
    %393 = vmatprep.subr.bf16.mxu0 0
    %394 = vmatpush1.bf16.msra.mxu0 %v363
    %395 = vmatprep.subr.bf16.mxu0 0
    %396 = vmatpush2.bf16.msra.mxu0 0
    %397 = vmatprep.subr.bf16.mxu0 0
    %398 = vmatpush2.bf16.msra.mxu0 0
    %399 = vmatprep.subr.bf16.mxu0 0
    %400 = vmatpush2.bf16.msra.mxu0 0
    %401 = vmatprep.subr.bf16.mxu0 0
    %402 = vmatpush2.bf16.msra.mxu0 0
    %403 = vmatprep.subr.bf16.mxu0 0
    %404 = vmatpush2.bf16.msra.mxu0 0
    %405 = vmatprep.subr.bf16.mxu0 0
    %406 = vmatpush2.bf16.msra.mxu0 0
    %407 = vmatprep.subr.bf16.mxu0 0
    %408 = vmatpush2.bf16.msra.mxu0 0
    %409 = vmatprep.subr.bf16.mxu0 0
    %410 = vmatpush2.bf16.msra.mxu0 0
    %411 = vmatprep.mubr.bf16.mxu0 0
    %412 = vmatmul.mubr.bf16.gmra.mxu0 %v307
    %v413 = vpop.f32.mrf.mxu0
    %v414 = vadd.f32 %v329, %v413
    %v415 = vpop.f32.mrf.mxu0
    %v416 = vpop.f32.mrf.mxu0
    %v417 = vpop.f32.mrf.mxu0
    %418 = vdwg.mxu0
    %vm419 = vcmask 244736
    %420 = vst.msk [vmem:[#allocation5] sm:$0xff] %vm419, %v414
    // Predicated region
    $region34: #{net_forward.1} parent=1 // pred_check
      _
    $region35: #{net_forward.1} parent=1 // pred_check_branch
      %422 = sbr.rel (0) target = $region37
    $region36: #{net_forward.1} parent=1 // pred_region
      %s424 = ssub.s32 128, 128
      %425 = vsyncadd [#allocation4], %s424
      %s427 = sshll.u32 [#allocation5], 4
      %s428 = int_to_ptr.vmem [resolvable:$true] %s427
      %430 = dma.vmem_to_hbm [thread:$0]  %s428, 128, %s7, [#allocation4]
    $region37: #{net_forward.1} parent=1 // pred_fallthru
      _
    // Predicated region
    $region38: #{net_forward.1} parent=1 // pred_check
      _
    $region39: #{net_forward.1} parent=1 // pred_check_branch
      %432 = sbr.rel (0) target = $region41
    $region40: #{net_forward.1} parent=1 // pred_region
      %433 = dma.done [#allocation4], 128
    $region41: #{net_forward.1} parent=1 // pred_fallthru
      _
    %434 = vsyncpa [#allocation3], 1
    %435 = vsyncpa [#allocation4], 1

</llo_original>
